<compile_context>
chip_gen: v6e
topology: v6e:2x2x1
jax: 0.10.0
libtpu: 0.0.40
codegen_flags: <defaults>
</compile_context>

<pallas_src>
import functools

import jax
import jax.numpy as jnp
from jax import lax
from jax.experimental import pallas as pl
from jax.experimental.pallas import tpu as pltpu


def _tv_loss_kernel(x_ref, o_ref, *, tb, cr, h, w, b, mask_rows):
    """One grid step: TV partial sum of a (tb, h*w) slab of flattened images.

    x_ref: (tb, h*w) VMEM tile (native dtype), one row per (n, c) image slab.
    o_ref: (1, 128) f32 per-block partial (lane-dense unmasked store).
    """
    hw = h * w
    nchunks = tb // cr

    # Hoisted constants (built once per grid step, reused by every chunk).
    # dw[:, j] pairs flat positions (j, j+1); drop pairs that straddle two
    # image rows, i.e. j % w == w - 1.
    if w > 1:
        j = lax.broadcasted_iota(jnp.int32, (cr, hw - 1), 1)
        w_keep = (j % w) != (w - 1)
    if mask_rows:
        row_iota = lax.broadcasted_iota(jnp.int32, (cr, 1), 0)
        row_base = pl.program_id(0) * tb

    def body(c, carry):
        acc_w, acc_h = carry
        start = c * cr
        if cr % 8 == 0:
            start = pl.multiple_of(start, 8)
        xc = x_ref[pl.ds(start, cr), :].astype(jnp.float32)
        if mask_rows:
            # Rows past B in the (ceil-div) remainder block hold garbage; zero
            # them before differencing (zero rows contribute exactly zero).
            valid = (row_base + start + row_iota) < b
            xc = jnp.where(valid, xc, 0.0)
        if w > 1:
            dw = xc[:, 1:] - xc[:, :-1]
            dw = jnp.where(w_keep, dw, 0.0)
            acc_w = acc_w + dw * dw
        if h > 1:
            # Lane shift by w == next image row; every such pair is valid in
            # the flattened layout, so no mask is needed.
            dh = xc[:, w:] - xc[:, :-w]
            acc_h = acc_h + dh * dh
        return acc_w, acc_h

    acc_w0 = jnp.zeros((cr, max(hw - 1, 1)), jnp.float32)
    acc_h0 = jnp.zeros((cr, max(hw - w, 1)), jnp.float32)
    acc_w, acc_h = lax.fori_loop(0, nchunks, body, (acc_w0, acc_h0),
                                 unroll=True)

    # One cross-lane reduce per tile; lane-dense store (single unmasked vst).
    total = jnp.sum(acc_w) + jnp.sum(acc_h)
    o_ref[...] = jnp.full((1, 128), total, dtype=jnp.float32)


def _round_down8(n):
    return (n // 8) * 8


def _plan(batch, hw):
    """Pick (TB rows per grid step, CR rows per in-kernel chunk, grid steps)."""
    if batch <= 8:
        return batch, batch, 1                      # block dims == array dims
    # ~2 MiB of f32 per input tile (sized against 4-byte elements even for
    # narrow input dtypes so v5e's 16 MiB scoped-VMEM default always holds).
    tb = max(8, _round_down8((2 * 1024 * 1024 // 4) // hw))
    tb = min(tb, _round_down8(batch))               # multiple of 8, <= batch
    nb = -(-batch // tb)
    # v7x megacore: make sure the parallel grid has >=2 steps when there is
    # enough work to split across the two TensorCores.
    if nb < 2 and batch >= 16:
        tb = max(8, _round_down8(-(-batch // 2)))
        nb = -(-batch // tb)
    # <=16 chunks per tile, multiple of 8, dividing TB (so the fully-unrolled
    # fori_loop covers the tile exactly).
    cr = max(8, _round_down8(tb // 16))
    while tb % cr:
        cr -= 8
    return tb, cr, nb


def tv_loss(x: jax.Array) -> jax.Array:
    """Total variation loss matching PyTorch TV_Loss.forward.

    x: (N, C, H, W). Returns a float32 scalar:
       sum((x[:,:,1:,:] - x[:,:,:-1,:])**2) + sum((x[:,:,:,1:] - x[:,:,:,:-1])**2)
    """
    n, c, h, w = x.shape
    b = n * c
    hw = h * w
    if b == 0 or hw < 2:
        return jnp.zeros((), jnp.float32)

    xf = x.reshape(b, hw)                     # free: merges contiguous dims
    tb, cr, nb = _plan(b, hw)
    mask_rows = (nb * tb != b)
    # TODO(synk): for very large single images (one H*W f32 row beyond the
    # per-generation VMEM budget, e.g. >~1024x1024 on v7x's 64 MiB) also tile
    # the flattened H*W axis with a small separate seam pass.

    kernel = functools.partial(_tv_loss_kernel, tb=tb, cr=cr, h=h, w=w, b=b,
                               mask_rows=mask_rows)
    partials = pl.pallas_call(
        kernel,
        out_shape=jax.ShapeDtypeStruct((nb, 128), jnp.float32),
        grid=(nb,),
        in_specs=[pl.BlockSpec((tb, hw), lambda i: (i, 0))],
        out_specs=pl.BlockSpec((1, 128), lambda i: (i, 0)),
        compiler_params=pltpu.CompilerParams(
            dimension_semantics=("parallel",),   # independent per-block partials
        ),
    )(xf)
    return jnp.sum(partials[:, 0])


def tv_loss_ref(x: jax.Array) -> jax.Array:
    x = x.astype(jnp.float32)
    tv_h = jnp.sum(jnp.square(x[:, :, 1:, :] - x[:, :, :-1, :]))
    tv_w = jnp.sum(jnp.square(x[:, :, :, 1:] - x[:, :, :, :-1]))
    return tv_h + tv_w


if __name__ == "__main__":
    key = jax.random.PRNGKey(0)
    x = jax.random.normal(key, (2, 4, 16, 16), dtype=jnp.float32)  # NCHW

    out = jax.block_until_ready(tv_loss(x))
    ref = jax.block_until_ready(tv_loss_ref(x))
    assert jnp.allclose(out, ref, rtol=1e-5, atol=1e-5), (out, ref)

    print("KERNEL_OK")
</pallas_src>

<mosaic_0001>
module attributes {stable_mosaic.version = 11 : i64} {
  func.func @_tv_loss_kernel(%arg0: i32, %arg1: memref<8x256xf32, #tpu.memory_space<vmem>>, %arg2: memref<1x128xf32, #tpu.memory_space<vmem>>) attributes {dimension_semantics = [#tpu.dimension_semantics<parallel>], iteration_bounds = array<i64: 1>, scalar_prefetch = 0 : i64, scratch_operands = 0 : i64, tpu.core_type = #tpu.core_type<tc>, window_params = [{transform_indices = @transform_0, window_bounds = array<i64: 8, 256>}, {transform_indices = @transform_1, window_bounds = array<i64: 1, 128>}]} {
    %0 = tpu.iota {dimensions = array<i32: 1>} : vector<8x255xi32>
    %c16_i32 = arith.constant 16 : i32
    %c0_i32 = arith.constant 0 : i32
    %1 = arith.cmpi eq, %c16_i32, %c0_i32 : i32
    %c1_i32 = arith.constant 1 : i32
    %2 = arith.select %1, %c1_i32, %c16_i32 : i32
    %3 = vector.broadcast %2 : i32 to vector<8x255xi32>
    %4 = arith.remsi %0, %3 : vector<8x255xi32>
    %c0_i32_0 = arith.constant 0 : i32
    %5 = vector.broadcast %c0_i32_0 : i32 to vector<8x255xi32>
    %6 = arith.cmpi ne, %4, %5 : vector<8x255xi32>
    %c0_i32_1 = arith.constant 0 : i32
    %7 = vector.broadcast %c0_i32_1 : i32 to vector<8x255xi32>
    %8 = arith.cmpi slt, %4, %7 : vector<8x255xi32>
    %c0_i32_2 = arith.constant 0 : i32
    %9 = arith.cmpi slt, %2, %c0_i32_2 : i32
    %10 = vector.broadcast %9 : i1 to vector<8x255xi1>
    %11 = vector.broadcast %10 : vector<8x255xi1> to vector<8x255xi1>
    %12 = arith.xori %8, %11 : vector<8x255xi1>
    %13 = arith.andi %12, %6 : vector<8x255xi1>
    %14 = vector.broadcast %2 : i32 to vector<8x255xi32>
    %15 = arith.addi %4, %14 : vector<8x255xi32>
    %16 = arith.select %13, %15, %4 : vector<8x255xi1>, vector<8x255xi32>
    %c15_i32 = arith.constant 15 : i32
    %17 = vector.broadcast %c15_i32 : i32 to vector<8x255xi32>
    %18 = arith.cmpi ne, %16, %17 : vector<8x255xi32>
    %cst = arith.constant 0.000000e+00 : f32
    %19 = vector.broadcast %cst : f32 to vector<8x255xf32>
    %cst_3 = arith.constant 0.000000e+00 : f32
    %20 = vector.broadcast %cst_3 : f32 to vector<8x240xf32>
    %c0_i32_4 = arith.constant 0 : i32
    %c8_i32 = arith.constant 8 : i32
    %21 = arith.muli %c0_i32_4, %c8_i32 : i32
    %22 = tpu.assume_multiple %21, 8 : i32
    %23 = arith.index_cast %22 : i32 to index
    %c0 = arith.constant 0 : index
    %24 = vector.load %arg1[%23, %c0] : memref<8x256xf32, #tpu.memory_space<vmem>>, vector<8x256xf32>
    %25 = vector.extract_strided_slice %24 {offsets = [0, 1], sizes = [8, 255], strides = [1, 1]} : vector<8x256xf32> to vector<8x255xf32>
    %26 = vector.extract_strided_slice %24 {offsets = [0, 0], sizes = [8, 255], strides = [1, 1]} : vector<8x256xf32> to vector<8x255xf32>
    %27 = arith.subf %25, %26 : vector<8x255xf32>
    %cst_5 = arith.constant 0.000000e+00 : f32
    %28 = vector.broadcast %cst_5 : f32 to vector<8x255xf32>
    %29 = arith.select %18, %27, %28 : vector<8x255xi1>, vector<8x255xf32>
    %30 = arith.mulf %29, %29 : vector<8x255xf32>
    %31 = arith.addf %19, %30 : vector<8x255xf32>
    %32 = vector.extract_strided_slice %24 {offsets = [0, 16], sizes = [8, 240], strides = [1, 1]} : vector<8x256xf32> to vector<8x240xf32>
    %33 = vector.extract_strided_slice %24 {offsets = [0, 0], sizes = [8, 240], strides = [1, 1]} : vector<8x256xf32> to vector<8x240xf32>
    %34 = arith.subf %32, %33 : vector<8x240xf32>
    %35 = arith.mulf %34, %34 : vector<8x240xf32>
    %36 = arith.addf %20, %35 : vector<8x240xf32>
    %c1_i32_6 = arith.constant 1 : i32
    %37 = vector.shape_cast %31 : vector<8x255xf32> to vector<1x8x255xf32>
    %cst_7 = arith.constant dense<0.000000e+00> : vector<1xf32>
    %38 = vector.multi_reduction <add>, %37, %cst_7 [1, 2] : vector<1x8x255xf32> to vector<1xf32>
    %39 = vector.shape_cast %38 : vector<1xf32> to vector<1x1x1xf32>
    %40 = vector.extract %39[0, 0, 0] : f32 from vector<1x1x1xf32>
    %41 = vector.shape_cast %36 : vector<8x240xf32> to vector<1x8x240xf32>
    %cst_8 = arith.constant dense<0.000000e+00> : vector<1xf32>
    %42 = vector.multi_reduction <add>, %41, %cst_8 [1, 2] : vector<1x8x240xf32> to vector<1xf32>
    %43 = vector.shape_cast %42 : vector<1xf32> to vector<1x1x1xf32>
    %44 = vector.extract %43[0, 0, 0] : f32 from vector<1x1x1xf32>
    %45 = arith.addf %40, %44 : f32
    %46 = vector.broadcast %45 : f32 to vector<1x128xf32>
    %c0_9 = arith.constant 0 : index
    %c0_10 = arith.constant 0 : index
    %47 = vector.load %arg2[%c0_9, %c0_10] : memref<1x128xf32, #tpu.memory_space<vmem>>, vector<1x128xf32>
    tpu.vector_store %arg2[%c0_9, %c0_10], %46 {strides = array<i32>} : memref<1x128xf32, #tpu.memory_space<vmem>>, vector<1x128xf32>,
    return
  }
  func.func @transform_0(%arg0: i32) -> (i32, i32) {
    %c0_i32 = arith.constant 0 : i32
    %c0_i32_0 = arith.constant 0 : i32
    return %arg0, %c0_i32 : i32, i32
  }
  func.func @transform_1(%arg0: i32) -> (i32, i32) {
    %c0_i32 = arith.constant 0 : i32
    %c0_i32_0 = arith.constant 0 : i32
    return %arg0, %c0_i32 : i32, i32
  }
}

</mosaic_0001>

<llo_original>
// kernel: tpu_custom_call.1
$region0: #{tpu_custom_call.1}
  #allocation0 [shape = 'u32[]', space=smem, size = 0x4, offset = 0x4, fixed_abs, tag = 'smem constant byte address 0x4 - core index']
  #allocation1 [shape = 'u32[144,128]{1,0:T(1,128)}', space=vmem, size = 0x12000, scoped, tag = 'internal scratch']
  %s0 = inlined_call_operand.hbm [shape: f32[8,256], index: 0, kind: input, shape index: {}]
  %s1 = inlined_call_operand.hbm [shape: f32[1,128], index: 1, kind: output, shape index: {}]
  %s2 = sld [smem:[#allocation0]]
  $region18: #{tpu_custom_call.1} parent=0
    _
  %s4 = ssub.s32 1, %s2
  %s5 = scalar_select 0, %s4, %s2
  $region1: #{tpu_custom_call.1} parent=0
    #allocation2 [shape = 'u8[8192]{0}', space=vmem, size = 0x2000, scoped, tag = 'input window, operand 0, single buffered']
    #allocation3 [shape = 's32[1]{0}', space=sflag, size = 0x4, scoped, tag = 'scoped memory for tpu_custom_call.1']
    #allocation4 [shape = 's32[1]{0}', space=sflag, size = 0x4, scoped, tag = 'scoped memory for tpu_custom_call.1']
    #allocation5 [shape = 'u8[512]{0}', space=vmem, size = 0x400, scoped, tag = 'output window, operand 0, single buffered']
    %6 = vsyncpa [#allocation3], 0
    %7 = vsyncpa [#allocation4], 0
    // Predicated region
    $region2: #{tpu_custom_call.1} parent=1 // pred_check
      _
    $region3: #{tpu_custom_call.1} parent=1 // pred_check_branch
      %9 = sbr.rel (0) target = $region5
    $region4: #{tpu_custom_call.1} parent=1 // pred_region
      %s11 = ssub.s32 256, 256
      %12 = vsyncadd [#allocation3], %s11
      %s14 = sshll.u32 [#allocation2], 4
      %s15 = int_to_ptr.vmem [resolvable:$true] %s14
      %17 = dma.hbm_to_vmem [thread:$0]  %s0, 256, %s15, [#allocation3]
    $region5: #{tpu_custom_call.1} parent=1 // pred_fallthru
      _
    // Predicated region
    $region6: #{tpu_custom_call.1} parent=1 // pred_check
      _
    $region7: #{tpu_custom_call.1} parent=1 // pred_check_branch
      %19 = sbr.rel (0) target = $region9
    $region8: #{tpu_custom_call.1} parent=1 // pred_region
      %20 = dma.done [#allocation3], 256
    $region9: #{tpu_custom_call.1} parent=1 // pred_fallthru
      _
    %v21 = vlaneseq
    %v22 = vand.u32 %v21, 127
    %v23 = vadd.s32 %v22, 128
    %vm24 = vcmp.lt.s32.totalorder %v22, 0
    %v25 = vsub.s32 0, %v22
    %v26 = vsel %vm24, %v25, %v22
    %v27 = vshrl.u32 %v26, 4
    %v28 = vand.u32 %v26, 15
    %v29 = vsub.s32 0, %v28
    %v30 = vsel %vm24, %v29, %v28
    %vm31 = vcmp.lt.s32.totalorder %v23, 0
    %v32 = vsub.s32 0, %v23
    %v33 = vsel %vm31, %v32, %v23
    %v34 = vshrl.u32 %v33, 4
    %v35 = vand.u32 %v33, 15
    %v36 = vsub.s32 0, %v35
    %v37 = vsel %vm31, %v36, %v35
    %vm38 = vcmp.ne.s32.totalorder %v30, 0
    %vm39 = vcmp.ne.s32.totalorder %v37, 0
    %vm40 = vcmp.lt.s32.totalorder %v30, 0
    %vm41 = vcmp.lt.s32.totalorder %v37, 0
    %vm42 = vmand %vm40, %vm38
    %vm43 = vmand %vm41, %vm39
    %v44 = vadd.s32 %v30, 16
    %v45 = vadd.s32 %v37, 16
    %v46 = vsel %vm42, %v44, %v30
    %v47 = vsel %vm43, %v45, %v37
    %vm48 = vcmp.ne.s32.totalorder %v46, 15
    %vm49 = vcmp.ne.s32.totalorder %v47, 15
    %s50 = smul.u32 0, 2
    %s51 = smul.addr %s50, 8
    %s52 = scalar_lea.vmem [#allocation2], %s51
    %v53 = vld [vmem:[%s52] sm:$0xff]
    %v54 = vld [vmem:[%s52 + $0x8] sm:$0xff]
    %57 = vrot.lane.b32.xlu0 %v53, 1
    %v58 = vpop.permute.xlu0 %57
    %59 = vrot.lane.b32.xlu0 %v54, 1
    %v60 = vpop.permute.xlu0 %59
    %vm61 = vcmask 7168
    %v62 = vsel %vm61, %v58, %v60
    %v65 = vsub.f32 %v53, %v58
    %v66 = vsub.f32 %v54, %v62
    %69 = vrot.lane.b32.xlu0 %v65, 127
    %v70 = vpop.permute.xlu0 %69
    %71 = vrot.lane.b32.xlu0 %v66, 127
    %v72 = vpop.permute.xlu0 %71
    %vm73 = vcmask 1039360
    %v74 = vsel %vm73, %v70, %v72
    %v77 = vsel %vm48, %v74, 0.0
    %v78 = vsel %vm49, %v72, 0.0
    %v79 = vmul.f32 %v77, %v77
    %v80 = vmul.f32 %v78, %v78
    %v81 = vadd.f32 %v79, 0.0
    %v82 = vadd.f32 %v80, 0.0
    %83 = vrot.lane.b32.xlu0 %v53, 16
    %v84 = vpop.permute.xlu0 %83
    %85 = vrot.lane.b32.xlu0 %v54, 16
    %v86 = vpop.permute.xlu0 %85
    %vm87 = vcmask 130048
    %v88 = vsel %vm87, %v84, %v86
    %v91 = vsub.f32 %v53, %v84
    %v92 = vsub.f32 %v54, %v88
    %v93 = vmul.f32 %v91, %v91
    %v94 = vmul.f32 %v92, %v92
    %v95 = vadd.f32 %v93, 0.0
    %v96 = vadd.f32 %v94, 0.0
    %v97 = vsel %vm73, %v82, 0.0
    %v98 = vadd.f32 %v81, %v97
    %99 = vadd.xlane.f32.xlu0 %v98
    %v100 = vpop.xlane.xlu0 %99
    %v101 = vrot.slane %v100, 4
    %v102 = vadd.f32 %v100, %v101
    %v103 = vrot.slane %v102, 2
    %v104 = vadd.f32 %v102, %v103
    %v105 = vrot.slane %v104, 1
    %v106 = vadd.f32 %v104, %v105
    %s107 = vtos %v106
    %110 = vrot.lane.b32.xlu0 %v95, 112
    %v111 = vpop.permute.xlu0 %110
    %112 = vrot.lane.b32.xlu0 %v96, 112
    %v113 = vpop.permute.xlu0 %112
    %vm114 = vcmask 916480
    %v115 = vsel %vm114, %v111, %v113
    %v118 = vsel %vm114, %v113, 0.0
    %v119 = vadd.f32 %v115, %v118
    %120 = vadd.xlane.f32.xlu0 %v119
    %v121 = vpop.xlane.xlu0 %120
    %v122 = vrot.slane %v121, 4
    %v123 = vadd.f32 %v121, %v122
    %v124 = vrot.slane %v123, 2
    %v125 = vadd.f32 %v123, %v124
    %v126 = vrot.slane %v125, 1
    %v127 = vadd.f32 %v125, %v126
    %s128 = vtos %v127
    %s129 = sadd.f32 %s107, %s128
    %v130 = vstv %s129
    %131 = vst [vmem:[#allocation5] sm:$0x1] %v130
    // Predicated region
    $region10: #{tpu_custom_call.1} parent=1 // pred_check
      _
    $region11: #{tpu_custom_call.1} parent=1 // pred_check_branch
      %133 = sbr.rel (0) target = $region13
    $region12: #{tpu_custom_call.1} parent=1 // pred_region
      %s135 = ssub.s32 16, 16
      %136 = vsyncadd [#allocation4], %s135
      %s138 = sshll.u32 [#allocation5], 4
      %s139 = int_to_ptr.vmem [resolvable:$true] %s138
      %141 = dma.vmem_to_hbm [thread:$0]  %s139, 16, %s1, [#allocation4]
    $region13: #{tpu_custom_call.1} parent=1 // pred_fallthru
      _
    // Predicated region
    $region14: #{tpu_custom_call.1} parent=1 // pred_check
      _
    $region15: #{tpu_custom_call.1} parent=1 // pred_check_branch
      %143 = sbr.rel (0) target = $region17
    $region16: #{tpu_custom_call.1} parent=1 // pred_region
      %144 = dma.done [#allocation4], 16
    $region17: #{tpu_custom_call.1} parent=1 // pred_fallthru
      _
    %145 = vsyncpa [#allocation3], 1
    %146 = vsyncpa [#allocation4], 1

</llo_original>
